<compile_context>
chip_gen: v5e
topology: v5e:2x2
jax: 0.10.0
libtpu: 0.0.40
codegen_flags: <defaults>
</compile_context>

<pallas_src>
import jax
import jax.numpy as jnp
import numpy as np
from jax.experimental import pallas as pl
from jax.experimental.pallas import tpu as pltpu

# ----------------------------------------------------------------------------
# Small shapes consistent with the module
# ----------------------------------------------------------------------------
BS = 2            # batch size
SEQ = 8           # sequence length (batch_first=True)
INPUT_DIM = 128   # hidden_input_dim (lane-dense)
HIDDEN = 32       # hidden_size -> 4*H = 128 gate width (lane-dense)
BS_PAD = 8        # batch padded to one full sublane group
OUT_PAD = 128     # padded lane-dense output width (>= 2*HIDDEN)


# ----------------------------------------------------------------------------
# Fused kernel: LSTM recurrence + attention-sum + concat([hn, sum_t h_t])
# ----------------------------------------------------------------------------
def _lstm_attn_kernel(x_ref, wih_ref, whh_ref, b_ref, o_ref):
    # x_ref:   (SEQ*BS_PAD, D)    bf16  time-major, batch zero-padded to 8 sublanes
    # wih_ref: (D, 4H)            bf16  (torch weight_ih_l0, pre-transposed)
    # whh_ref: (H, 4H)            bf16  (torch weight_hh_l0, pre-transposed)
    # b_ref:   (1, 4H)            f32   (b_ih_l0 + b_hh_l0)
    # o_ref:   (BS_PAD, OUT_PAD)  f32   cols [0:2H) = cat([hn, sum_t h_t])
    f32 = jnp.float32
    bf16 = jnp.bfloat16
    H = HIDDEN
    T = SEQ
    B = BS_PAD

    # Hoisted input projection for all timesteps: one MXU matmul, bf16 operands with
    # f32 accumulation, fused bias added once.  Rows t*8:(t+1)*8 belong to timestep t,
    # so each per-step read below is a whole (8,128) f32 vreg.
    gates_x = (jnp.dot(x_ref[...], wih_ref[...], preferred_element_type=f32)
               + b_ref[...])                                  # (T*B, 4H) f32

    whh = whh_ref[...]                                        # loop-invariant bf16 RHS

    h = jnp.zeros((B, H), f32)
    c = jnp.zeros((B, H), f32)
    h_sum = jnp.zeros((B, H), f32)
    for t in range(T):  # short static recurrence, fully unrolled
        gates = gates_x[t * B:(t + 1) * B, :] + jnp.dot(
            h.astype(bf16), whh, preferred_element_type=f32)  # (8,128) f32
        # Full-width activations: 2 EUP passes per step instead of 4 narrow slices.
        sig = jax.nn.sigmoid(gates)
        th = jnp.tanh(gates)
        i = sig[:, 0 * H:1 * H]
        f = sig[:, 1 * H:2 * H]
        g = th[:, 2 * H:3 * H]
        o = sig[:, 3 * H:4 * H]
        c = f * c + i * g
        h = o * jnp.tanh(c)
        h_sum = h_sum + h

    # torch: weight = softmax(bmm(hn, output^T), dim=1) — softmax over a size-1 dim is
    # identically 1, so the weighted sum over time equals the plain sum (exact).
    # out = cat([hn.squeeze(1), sum_t h_t], dim=1), padded to one unmasked (8,128) store.
    pad = jnp.zeros((B, OUT_PAD - 2 * H), f32)
    o_ref[...] = jnp.concatenate([h, h_sum, pad], axis=-1)


@jax.jit
def lstm_forward(params, x):
    bs, T, D = x.shape
    # Time-major layout, batch zero-padded to 8 sublanes, flattened to (T*8, D),
    # pre-cast to bf16 (MXU operand dtype) in the wrapper.
    x_tm = jnp.transpose(x, (1, 0, 2))
    x_tm = jnp.pad(x_tm, ((0, 0), (0, BS_PAD - bs), (0, 0)))
    x_tm = x_tm.reshape(T * BS_PAD, D).astype(jnp.bfloat16)

    vmem = pl.BlockSpec(memory_space=pltpu.MemorySpace.VMEM)
    out = pl.pallas_call(
        _lstm_attn_kernel,
        out_shape=jax.ShapeDtypeStruct((BS_PAD, OUT_PAD), jnp.float32),
        in_specs=[vmem, vmem, vmem, vmem],
        out_specs=vmem,
    )(x_tm, params["w_ih"], params["w_hh"], params["b"])
    return out[:bs, :2 * HIDDEN]


# ----------------------------------------------------------------------------
# Parameters (PyTorch default init: uniform(-1/sqrt(hidden), 1/sqrt(hidden)))
# ----------------------------------------------------------------------------
def init_params(key):
    k1, k2, k3, k4 = jax.random.split(key, 4)
    H = HIDDEN
    bound = 1.0 / np.sqrt(H)

    def u(k, shape):
        return jax.random.uniform(k, shape, jnp.float32, -bound, bound)

    w_ih = u(k1, (4 * H, INPUT_DIM))   # torch weight_ih_l0
    w_hh = u(k2, (4 * H, H))           # torch weight_hh_l0
    b_ih = u(k3, (4 * H,))
    b_hh = u(k4, (4 * H,))

    kernel_params = {
        "w_ih": w_ih.T.astype(jnp.bfloat16),     # (D, 4H) bf16, pre-cast for the MXU
        "w_hh": w_hh.T.astype(jnp.bfloat16),     # (H, 4H) bf16
        "b": (b_ih + b_hh).reshape(1, 4 * H),    # fused bias, f32
    }
    ref_params = {
        "w_ih": w_ih.T,                          # full-precision for the reference
        "w_hh": w_hh.T,
        "b": (b_ih + b_hh).reshape(1, 4 * H),
    }
    return kernel_params, ref_params


# ----------------------------------------------------------------------------
# Pure-JAX reference mirroring the PyTorch forward (including the softmax ceremony)
# ----------------------------------------------------------------------------
def lstm_reference(params, x):
    bs, T, _ = x.shape
    H = HIDDEN
    h = jnp.zeros((bs, H), jnp.float32)
    c = jnp.zeros((bs, H), jnp.float32)
    hs = []
    for t in range(T):
        g = x[:, t, :] @ params["w_ih"] + h @ params["w_hh"] + params["b"]
        i = jax.nn.sigmoid(g[:, :H])
        f = jax.nn.sigmoid(g[:, H:2 * H])
        gg = jnp.tanh(g[:, 2 * H:3 * H])
        o = jax.nn.sigmoid(g[:, 3 * H:])
        c = f * c + i * gg
        h = o * jnp.tanh(c)
        hs.append(h)
    output = jnp.stack(hs, axis=1)                       # (bs, T, H)
    hn = h[:, None, :]                                   # (bs, 1, H)
    weight = jnp.einsum('bih,bth->bit', hn, output)      # (bs, 1, T)
    weight = jax.nn.softmax(weight, axis=1)              # softmax over size-1 dim
    weight = jnp.transpose(weight, (0, 2, 1))            # (bs, T, 1)
    summed = jnp.sum(weight * output, axis=1)            # (bs, H)
    return jnp.concatenate([h, summed], axis=1)          # (bs, 2H)


if __name__ == "__main__":
    key = jax.random.PRNGKey(0)
    pkey, xkey = jax.random.split(key)
    kernel_params, ref_params = init_params(pkey)

    x = jax.random.normal(xkey, (BS, SEQ, INPUT_DIM), jnp.float32)

    out = jax.block_until_ready(lstm_forward(kernel_params, x))
    assert out.shape == (BS, 2 * HIDDEN), out.shape

    ref = jax.block_until_ready(lstm_reference(ref_params, x))
    np.testing.assert_allclose(np.asarray(out), np.asarray(ref), rtol=5e-2, atol=5e-2)

    print("KERNEL_OK")
</pallas_src>

<mosaic_0001>
module attributes {stable_mosaic.version = 11 : i64} {
  func.func @_lstm_attn_kernel(%arg0: memref<64x128xbf16, #tpu.memory_space<vmem>>, %arg1: memref<128x128xbf16, #tpu.memory_space<vmem>>, %arg2: memref<32x128xbf16, #tpu.memory_space<vmem>>, %arg3: memref<1x128xf32, #tpu.memory_space<vmem>>, %arg4: memref<8x128xf32, #tpu.memory_space<vmem>>) attributes {dimension_semantics = [], scalar_prefetch = 0 : i64, scratch_operands = 0 : i64, tpu.core_type = #tpu.core_type<tc>} {
    %c0 = arith.constant 0 : index
    %c0_0 = arith.constant 0 : index
    %0 = vector.load %arg0[%c0, %c0_0] : memref<64x128xbf16, #tpu.memory_space<vmem>>, vector<64x128xbf16>
    %c0_1 = arith.constant 0 : index
    %c0_2 = arith.constant 0 : index
    %1 = vector.load %arg1[%c0_1, %c0_2] : memref<128x128xbf16, #tpu.memory_space<vmem>>, vector<128x128xbf16>
    %cst = arith.constant dense<0.000000e+00> : vector<64x128xf32>
    %2 = tpu.matmul %0, %1, %cst {dimension_numbers = #tpu.dot_dimension_numbers<[1], [0], [0], [1], [0, 0, 1, 1], [], []>} : vector<64x128xbf16>, vector<128x128xbf16>, vector<64x128xf32> -> vector<64x128xf32>
    %c0_3 = arith.constant 0 : index
    %c0_4 = arith.constant 0 : index
    %3 = vector.load %arg3[%c0_3, %c0_4] : memref<1x128xf32, #tpu.memory_space<vmem>>, vector<1x128xf32>
    %4 = vector.broadcast %3 : vector<1x128xf32> to vector<64x128xf32>
    %5 = arith.addf %2, %4 : vector<64x128xf32>
    %c0_5 = arith.constant 0 : index
    %c0_6 = arith.constant 0 : index
    %6 = vector.load %arg2[%c0_5, %c0_6] : memref<32x128xbf16, #tpu.memory_space<vmem>>, vector<32x128xbf16>
    %cst_7 = arith.constant 0.000000e+00 : f32
    %7 = vector.broadcast %cst_7 : f32 to vector<8x32xf32>
    %cst_8 = arith.constant 0.000000e+00 : f32
    %8 = vector.broadcast %cst_8 : f32 to vector<8x32xf32>
    %cst_9 = arith.constant 0.000000e+00 : f32
    %9 = vector.broadcast %cst_9 : f32 to vector<8x32xf32>
    %10 = vector.extract_strided_slice %5 {offsets = [0, 0], sizes = [8, 128], strides = [1, 1]} : vector<64x128xf32> to vector<8x128xf32>
    %11 = arith.truncf %7 : vector<8x32xf32> to vector<8x32xbf16>
    %cst_10 = arith.constant dense<0.000000e+00> : vector<8x128xf32>
    %12 = tpu.matmul %11, %6, %cst_10 {dimension_numbers = #tpu.dot_dimension_numbers<[1], [0], [0], [1], [0, 0, 1, 1], [], []>} : vector<8x32xbf16>, vector<32x128xbf16>, vector<8x128xf32> -> vector<8x128xf32>
    %13 = arith.addf %10, %12 : vector<8x128xf32>
    %14 = arith.negf %13 : vector<8x128xf32>
    %15 = math.exp %14 : vector<8x128xf32>
    %cst_11 = arith.constant 1.000000e+00 : f32
    %16 = vector.broadcast %cst_11 : f32 to vector<8x128xf32>
    %17 = arith.addf %16, %15 : vector<8x128xf32>
    %18 = arith.divf %16, %17 : vector<8x128xf32>
    %19 = math.tanh %13 : vector<8x128xf32>
    %20 = vector.extract_strided_slice %18 {offsets = [0, 0], sizes = [8, 32], strides = [1, 1]} : vector<8x128xf32> to vector<8x32xf32>
    %21 = vector.extract_strided_slice %18 {offsets = [0, 32], sizes = [8, 32], strides = [1, 1]} : vector<8x128xf32> to vector<8x32xf32>
    %22 = vector.extract_strided_slice %19 {offsets = [0, 64], sizes = [8, 32], strides = [1, 1]} : vector<8x128xf32> to vector<8x32xf32>
    %23 = vector.extract_strided_slice %18 {offsets = [0, 96], sizes = [8, 32], strides = [1, 1]} : vector<8x128xf32> to vector<8x32xf32>
    %24 = arith.mulf %21, %8 : vector<8x32xf32>
    %25 = arith.mulf %20, %22 : vector<8x32xf32>
    %26 = arith.addf %24, %25 : vector<8x32xf32>
    %27 = math.tanh %26 : vector<8x32xf32>
    %28 = arith.mulf %23, %27 : vector<8x32xf32>
    %29 = arith.addf %9, %28 : vector<8x32xf32>
    %30 = vector.extract_strided_slice %5 {offsets = [8, 0], sizes = [8, 128], strides = [1, 1]} : vector<64x128xf32> to vector<8x128xf32>
    %31 = arith.truncf %28 : vector<8x32xf32> to vector<8x32xbf16>
    %cst_12 = arith.constant dense<0.000000e+00> : vector<8x128xf32>
    %32 = tpu.matmul %31, %6, %cst_12 {dimension_numbers = #tpu.dot_dimension_numbers<[1], [0], [0], [1], [0, 0, 1, 1], [], []>} : vector<8x32xbf16>, vector<32x128xbf16>, vector<8x128xf32> -> vector<8x128xf32>
    %33 = arith.addf %30, %32 : vector<8x128xf32>
    %34 = arith.negf %33 : vector<8x128xf32>
    %35 = math.exp %34 : vector<8x128xf32>
    %cst_13 = arith.constant 1.000000e+00 : f32
    %36 = vector.broadcast %cst_13 : f32 to vector<8x128xf32>
    %37 = arith.addf %36, %35 : vector<8x128xf32>
    %38 = arith.divf %36, %37 : vector<8x128xf32>
    %39 = math.tanh %33 : vector<8x128xf32>
    %40 = vector.extract_strided_slice %38 {offsets = [0, 0], sizes = [8, 32], strides = [1, 1]} : vector<8x128xf32> to vector<8x32xf32>
    %41 = vector.extract_strided_slice %38 {offsets = [0, 32], sizes = [8, 32], strides = [1, 1]} : vector<8x128xf32> to vector<8x32xf32>
    %42 = vector.extract_strided_slice %39 {offsets = [0, 64], sizes = [8, 32], strides = [1, 1]} : vector<8x128xf32> to vector<8x32xf32>
    %43 = vector.extract_strided_slice %38 {offsets = [0, 96], sizes = [8, 32], strides = [1, 1]} : vector<8x128xf32> to vector<8x32xf32>
    %44 = arith.mulf %41, %26 : vector<8x32xf32>
    %45 = arith.mulf %40, %42 : vector<8x32xf32>
    %46 = arith.addf %44, %45 : vector<8x32xf32>
    %47 = math.tanh %46 : vector<8x32xf32>
    %48 = arith.mulf %43, %47 : vector<8x32xf32>
    %49 = arith.addf %29, %48 : vector<8x32xf32>
    %50 = vector.extract_strided_slice %5 {offsets = [16, 0], sizes = [8, 128], strides = [1, 1]} : vector<64x128xf32> to vector<8x128xf32>
    %51 = arith.truncf %48 : vector<8x32xf32> to vector<8x32xbf16>
    %cst_14 = arith.constant dense<0.000000e+00> : vector<8x128xf32>
    %52 = tpu.matmul %51, %6, %cst_14 {dimension_numbers = #tpu.dot_dimension_numbers<[1], [0], [0], [1], [0, 0, 1, 1], [], []>} : vector<8x32xbf16>, vector<32x128xbf16>, vector<8x128xf32> -> vector<8x128xf32>
    %53 = arith.addf %50, %52 : vector<8x128xf32>
    %54 = arith.negf %53 : vector<8x128xf32>
    %55 = math.exp %54 : vector<8x128xf32>
    %cst_15 = arith.constant 1.000000e+00 : f32
    %56 = vector.broadcast %cst_15 : f32 to vector<8x128xf32>
    %57 = arith.addf %56, %55 : vector<8x128xf32>
    %58 = arith.divf %56, %57 : vector<8x128xf32>
    %59 = math.tanh %53 : vector<8x128xf32>
    %60 = vector.extract_strided_slice %58 {offsets = [0, 0], sizes = [8, 32], strides = [1, 1]} : vector<8x128xf32> to vector<8x32xf32>
    %61 = vector.extract_strided_slice %58 {offsets = [0, 32], sizes = [8, 32], strides = [1, 1]} : vector<8x128xf32> to vector<8x32xf32>
    %62 = vector.extract_strided_slice %59 {offsets = [0, 64], sizes = [8, 32], strides = [1, 1]} : vector<8x128xf32> to vector<8x32xf32>
    %63 = vector.extract_strided_slice %58 {offsets = [0, 96], sizes = [8, 32], strides = [1, 1]} : vector<8x128xf32> to vector<8x32xf32>
    %64 = arith.mulf %61, %46 : vector<8x32xf32>
    %65 = arith.mulf %60, %62 : vector<8x32xf32>
    %66 = arith.addf %64, %65 : vector<8x32xf32>
    %67 = math.tanh %66 : vector<8x32xf32>
    %68 = arith.mulf %63, %67 : vector<8x32xf32>
    %69 = arith.addf %49, %68 : vector<8x32xf32>
    %70 = vector.extract_strided_slice %5 {offsets = [24, 0], sizes = [8, 128], strides = [1, 1]} : vector<64x128xf32> to vector<8x128xf32>
    %71 = arith.truncf %68 : vector<8x32xf32> to vector<8x32xbf16>
    %cst_16 = arith.constant dense<0.000000e+00> : vector<8x128xf32>
    %72 = tpu.matmul %71, %6, %cst_16 {dimension_numbers = #tpu.dot_dimension_numbers<[1], [0], [0], [1], [0, 0, 1, 1], [], []>} : vector<8x32xbf16>, vector<32x128xbf16>, vector<8x128xf32> -> vector<8x128xf32>
    %73 = arith.addf %70, %72 : vector<8x128xf32>
    %74 = arith.negf %73 : vector<8x128xf32>
    %75 = math.exp %74 : vector<8x128xf32>
    %cst_17 = arith.constant 1.000000e+00 : f32
    %76 = vector.broadcast %cst_17 : f32 to vector<8x128xf32>
    %77 = arith.addf %76, %75 : vector<8x128xf32>
    %78 = arith.divf %76, %77 : vector<8x128xf32>
    %79 = math.tanh %73 : vector<8x128xf32>
    %80 = vector.extract_strided_slice %78 {offsets = [0, 0], sizes = [8, 32], strides = [1, 1]} : vector<8x128xf32> to vector<8x32xf32>
    %81 = vector.extract_strided_slice %78 {offsets = [0, 32], sizes = [8, 32], strides = [1, 1]} : vector<8x128xf32> to vector<8x32xf32>
    %82 = vector.extract_strided_slice %79 {offsets = [0, 64], sizes = [8, 32], strides = [1, 1]} : vector<8x128xf32> to vector<8x32xf32>
    %83 = vector.extract_strided_slice %78 {offsets = [0, 96], sizes = [8, 32], strides = [1, 1]} : vector<8x128xf32> to vector<8x32xf32>
    %84 = arith.mulf %81, %66 : vector<8x32xf32>
    %85 = arith.mulf %80, %82 : vector<8x32xf32>
    %86 = arith.addf %84, %85 : vector<8x32xf32>
    %87 = math.tanh %86 : vector<8x32xf32>
    %88 = arith.mulf %83, %87 : vector<8x32xf32>
    %89 = arith.addf %69, %88 : vector<8x32xf32>
    %90 = vector.extract_strided_slice %5 {offsets = [32, 0], sizes = [8, 128], strides = [1, 1]} : vector<64x128xf32> to vector<8x128xf32>
    %91 = arith.truncf %88 : vector<8x32xf32> to vector<8x32xbf16>
    %cst_18 = arith.constant dense<0.000000e+00> : vector<8x128xf32>
    %92 = tpu.matmul %91, %6, %cst_18 {dimension_numbers = #tpu.dot_dimension_numbers<[1], [0], [0], [1], [0, 0, 1, 1], [], []>} : vector<8x32xbf16>, vector<32x128xbf16>, vector<8x128xf32> -> vector<8x128xf32>
    %93 = arith.addf %90, %92 : vector<8x128xf32>
    %94 = arith.negf %93 : vector<8x128xf32>
    %95 = math.exp %94 : vector<8x128xf32>
    %cst_19 = arith.constant 1.000000e+00 : f32
    %96 = vector.broadcast %cst_19 : f32 to vector<8x128xf32>
    %97 = arith.addf %96, %95 : vector<8x128xf32>
    %98 = arith.divf %96, %97 : vector<8x128xf32>
    %99 = math.tanh %93 : vector<8x128xf32>
    %100 = vector.extract_strided_slice %98 {offsets = [0, 0], sizes = [8, 32], strides = [1, 1]} : vector<8x128xf32> to vector<8x32xf32>
    %101 = vector.extract_strided_slice %98 {offsets = [0, 32], sizes = [8, 32], strides = [1, 1]} : vector<8x128xf32> to vector<8x32xf32>
    %102 = vector.extract_strided_slice %99 {offsets = [0, 64], sizes = [8, 32], strides = [1, 1]} : vector<8x128xf32> to vector<8x32xf32>
    %103 = vector.extract_strided_slice %98 {offsets = [0, 96], sizes = [8, 32], strides = [1, 1]} : vector<8x128xf32> to vector<8x32xf32>
    %104 = arith.mulf %101, %86 : vector<8x32xf32>
    %105 = arith.mulf %100, %102 : vector<8x32xf32>
    %106 = arith.addf %104, %105 : vector<8x32xf32>
    %107 = math.tanh %106 : vector<8x32xf32>
    %108 = arith.mulf %103, %107 : vector<8x32xf32>
    %109 = arith.addf %89, %108 : vector<8x32xf32>
    %110 = vector.extract_strided_slice %5 {offsets = [40, 0], sizes = [8, 128], strides = [1, 1]} : vector<64x128xf32> to vector<8x128xf32>
    %111 = arith.truncf %108 : vector<8x32xf32> to vector<8x32xbf16>
    %cst_20 = arith.constant dense<0.000000e+00> : vector<8x128xf32>
    %112 = tpu.matmul %111, %6, %cst_20 {dimension_numbers = #tpu.dot_dimension_numbers<[1], [0], [0], [1], [0, 0, 1, 1], [], []>} : vector<8x32xbf16>, vector<32x128xbf16>, vector<8x128xf32> -> vector<8x128xf32>
    %113 = arith.addf %110, %112 : vector<8x128xf32>
    %114 = arith.negf %113 : vector<8x128xf32>
    %115 = math.exp %114 : vector<8x128xf32>
    %cst_21 = arith.constant 1.000000e+00 : f32
    %116 = vector.broadcast %cst_21 : f32 to vector<8x128xf32>
    %117 = arith.addf %116, %115 : vector<8x128xf32>
    %118 = arith.divf %116, %117 : vector<8x128xf32>
    %119 = math.tanh %113 : vector<8x128xf32>
    %120 = vector.extract_strided_slice %118 {offsets = [0, 0], sizes = [8, 32], strides = [1, 1]} : vector<8x128xf32> to vector<8x32xf32>
    %121 = vector.extract_strided_slice %118 {offsets = [0, 32], sizes = [8, 32], strides = [1, 1]} : vector<8x128xf32> to vector<8x32xf32>
    %122 = vector.extract_strided_slice %119 {offsets = [0, 64], sizes = [8, 32], strides = [1, 1]} : vector<8x128xf32> to vector<8x32xf32>
    %123 = vector.extract_strided_slice %118 {offsets = [0, 96], sizes = [8, 32], strides = [1, 1]} : vector<8x128xf32> to vector<8x32xf32>
    %124 = arith.mulf %121, %106 : vector<8x32xf32>
    %125 = arith.mulf %120, %122 : vector<8x32xf32>
    %126 = arith.addf %124, %125 : vector<8x32xf32>
    %127 = math.tanh %126 : vector<8x32xf32>
    %128 = arith.mulf %123, %127 : vector<8x32xf32>
    %129 = arith.addf %109, %128 : vector<8x32xf32>
    %130 = vector.extract_strided_slice %5 {offsets = [48, 0], sizes = [8, 128], strides = [1, 1]} : vector<64x128xf32> to vector<8x128xf32>
    %131 = arith.truncf %128 : vector<8x32xf32> to vector<8x32xbf16>
    %cst_22 = arith.constant dense<0.000000e+00> : vector<8x128xf32>
    %132 = tpu.matmul %131, %6, %cst_22 {dimension_numbers = #tpu.dot_dimension_numbers<[1], [0], [0], [1], [0, 0, 1, 1], [], []>} : vector<8x32xbf16>, vector<32x128xbf16>, vector<8x128xf32> -> vector<8x128xf32>
    %133 = arith.addf %130, %132 : vector<8x128xf32>
    %134 = arith.negf %133 : vector<8x128xf32>
    %135 = math.exp %134 : vector<8x128xf32>
    %cst_23 = arith.constant 1.000000e+00 : f32
    %136 = vector.broadcast %cst_23 : f32 to vector<8x128xf32>
    %137 = arith.addf %136, %135 : vector<8x128xf32>
    %138 = arith.divf %136, %137 : vector<8x128xf32>
    %139 = math.tanh %133 : vector<8x128xf32>
    %140 = vector.extract_strided_slice %138 {offsets = [0, 0], sizes = [8, 32], strides = [1, 1]} : vector<8x128xf32> to vector<8x32xf32>
    %141 = vector.extract_strided_slice %138 {offsets = [0, 32], sizes = [8, 32], strides = [1, 1]} : vector<8x128xf32> to vector<8x32xf32>
    %142 = vector.extract_strided_slice %139 {offsets = [0, 64], sizes = [8, 32], strides = [1, 1]} : vector<8x128xf32> to vector<8x32xf32>
    %143 = vector.extract_strided_slice %138 {offsets = [0, 96], sizes = [8, 32], strides = [1, 1]} : vector<8x128xf32> to vector<8x32xf32>
    %144 = arith.mulf %141, %126 : vector<8x32xf32>
    %145 = arith.mulf %140, %142 : vector<8x32xf32>
    %146 = arith.addf %144, %145 : vector<8x32xf32>
    %147 = math.tanh %146 : vector<8x32xf32>
    %148 = arith.mulf %143, %147 : vector<8x32xf32>
    %149 = arith.addf %129, %148 : vector<8x32xf32>
    %150 = vector.extract_strided_slice %5 {offsets = [56, 0], sizes = [8, 128], strides = [1, 1]} : vector<64x128xf32> to vector<8x128xf32>
    %151 = arith.truncf %148 : vector<8x32xf32> to vector<8x32xbf16>
    %cst_24 = arith.constant dense<0.000000e+00> : vector<8x128xf32>
    %152 = tpu.matmul %151, %6, %cst_24 {dimension_numbers = #tpu.dot_dimension_numbers<[1], [0], [0], [1], [0, 0, 1, 1], [], []>} : vector<8x32xbf16>, vector<32x128xbf16>, vector<8x128xf32> -> vector<8x128xf32>
    %153 = arith.addf %150, %152 : vector<8x128xf32>
    %154 = arith.negf %153 : vector<8x128xf32>
    %155 = math.exp %154 : vector<8x128xf32>
    %cst_25 = arith.constant 1.000000e+00 : f32
    %156 = vector.broadcast %cst_25 : f32 to vector<8x128xf32>
    %157 = arith.addf %156, %155 : vector<8x128xf32>
    %158 = arith.divf %156, %157 : vector<8x128xf32>
    %159 = math.tanh %153 : vector<8x128xf32>
    %160 = vector.extract_strided_slice %158 {offsets = [0, 0], sizes = [8, 32], strides = [1, 1]} : vector<8x128xf32> to vector<8x32xf32>
    %161 = vector.extract_strided_slice %158 {offsets = [0, 32], sizes = [8, 32], strides = [1, 1]} : vector<8x128xf32> to vector<8x32xf32>
    %162 = vector.extract_strided_slice %159 {offsets = [0, 64], sizes = [8, 32], strides = [1, 1]} : vector<8x128xf32> to vector<8x32xf32>
    %163 = vector.extract_strided_slice %158 {offsets = [0, 96], sizes = [8, 32], strides = [1, 1]} : vector<8x128xf32> to vector<8x32xf32>
    %164 = arith.mulf %161, %146 : vector<8x32xf32>
    %165 = arith.mulf %160, %162 : vector<8x32xf32>
    %166 = arith.addf %164, %165 : vector<8x32xf32>
    %167 = math.tanh %166 : vector<8x32xf32>
    %168 = arith.mulf %163, %167 : vector<8x32xf32>
    %169 = arith.addf %149, %168 : vector<8x32xf32>
    %cst_26 = arith.constant 0.000000e+00 : f32
    %170 = vector.broadcast %cst_26 : f32 to vector<8x64xf32>
    %171 = tpu.concatenate %168, %169, %170 in 1 : vector<8x32xf32>, vector<8x32xf32>, vector<8x64xf32> -> vector<8x128xf32>
    %c0_27 = arith.constant 0 : index
    %c0_28 = arith.constant 0 : index
    %172 = vector.load %arg4[%c0_27, %c0_28] : memref<8x128xf32, #tpu.memory_space<vmem>>, vector<8x128xf32>
    tpu.vector_store %arg4[%c0_27, %c0_28], %171 {strides = array<i32>} : memref<8x128xf32, #tpu.memory_space<vmem>>, vector<8x128xf32>,
    return
  }
}

</mosaic_0001>

<llo_original>
// kernel: lstm_forward.1
$region0: #{lstm_forward.1}
  #allocation0 [shape = 'u32[]', space=smem, size = 0x4, offset = 0x4, fixed_abs, tag = 'smem constant byte address 0x4 - core index']
  #allocation1 [shape = 'u32[72,128]{1,0:T(1,128)}', space=vmem, size = 0x9000, scoped, tag = 'internal scratch']
  %s0 = inlined_call_operand.vmem [shape: bf16[64,128], index: 0, kind: input, shape index: {}]
  %s1 = inlined_call_operand.vmem [shape: bf16[128,128], index: 1, kind: input, shape index: {}]
  %s2 = inlined_call_operand.vmem [shape: bf16[32,128], index: 2, kind: input, shape index: {}]
  %s3 = inlined_call_operand.vmem [shape: f32[1,128], index: 3, kind: input, shape index: {}]
  %s4 = inlined_call_operand.vmem [shape: f32[8,128], index: 4, kind: output, shape index: {}]
  %s5 = sld [smem:[#allocation0]]
  $region26: #{lstm_forward.1} parent=0
    _
  %s7 = ssub.s32 1, %s5
  %s8 = scalar_select 0, %s7, %s5
  // Predicated region
  $region2: #{lstm_forward.1} parent=0 // pred_check
    _
  $region3: #{lstm_forward.1} parent=0 // pred_check_branch
    %10 = sbr.rel (0) target = $region5
  $region4: #{lstm_forward.1} parent=0 // pred_region
    _
  $region5: #{lstm_forward.1} parent=0 // pred_fallthru
    _
  // Predicated region
  $region6: #{lstm_forward.1} parent=0 // pred_check
    _
  $region7: #{lstm_forward.1} parent=0 // pred_check_branch
    %12 = sbr.rel (0) target = $region9
  $region8: #{lstm_forward.1} parent=0 // pred_region
    _
  $region9: #{lstm_forward.1} parent=0 // pred_fallthru
    _
  // Predicated region
  $region10: #{lstm_forward.1} parent=0 // pred_check
    _
  $region11: #{lstm_forward.1} parent=0 // pred_check_branch
    %14 = sbr.rel (0) target = $region13
  $region12: #{lstm_forward.1} parent=0 // pred_region
    _
  $region13: #{lstm_forward.1} parent=0 // pred_fallthru
    _
  // Predicated region
  $region14: #{lstm_forward.1} parent=0 // pred_check
    _
  $region15: #{lstm_forward.1} parent=0 // pred_check_branch
    %16 = sbr.rel (0) target = $region17
  $region16: #{lstm_forward.1} parent=0 // pred_region
    _
  $region17: #{lstm_forward.1} parent=0 // pred_fallthru
    _
  %v18 = vld [vmem:[%s0] sm:$0xf]
  %v19 = vld [vmem:[%s0 + $0x4] sm:$0xf]
  %v20 = vld [vmem:[%s0 + $0x8] sm:$0xf]
  %v21 = vld [vmem:[%s0 + $0xc] sm:$0xf]
  %v22 = vld [vmem:[%s0 + $0x10] sm:$0xf]
  %v23 = vld [vmem:[%s0 + $0x14] sm:$0xf]
  %v24 = vld [vmem:[%s0 + $0x18] sm:$0xf]
  %v25 = vld [vmem:[%s0 + $0x1c] sm:$0xf]
  %v26 = vld [vmem:[%s1] sm:$0xf]
  %v27 = vld [vmem:[%s1 + $0x4] sm:$0xf]
  %v28 = vld [vmem:[%s1 + $0x8] sm:$0xf]
  %v29 = vld [vmem:[%s1 + $0xc] sm:$0xf]
  %v30 = vld [vmem:[%s1 + $0x10] sm:$0xf]
  %v31 = vld [vmem:[%s1 + $0x14] sm:$0xf]
  %v32 = vld [vmem:[%s1 + $0x18] sm:$0xf]
  %v33 = vld [vmem:[%s1 + $0x1c] sm:$0xf]
  %v34 = vld [vmem:[%s1 + $0x20] sm:$0xf]
  %v35 = vld [vmem:[%s1 + $0x24] sm:$0xf]
  %v36 = vld [vmem:[%s1 + $0x28] sm:$0xf]
  %v37 = vld [vmem:[%s1 + $0x2c] sm:$0xf]
  %v38 = vld [vmem:[%s1 + $0x30] sm:$0xf]
  %v39 = vld [vmem:[%s1 + $0x34] sm:$0xf]
  %v40 = vld [vmem:[%s1 + $0x38] sm:$0xf]
  %v41 = vld [vmem:[%s1 + $0x3c] sm:$0xf]
  %v42 = vld [vmem:[%s3] sm:$0x1]
  %v44 = vperm.slane %v42, 0
  %v54 = vunpack.c.l.b16 %v18
  %v55 = vunpack.c.l.b16 %v19
  %v56 = vunpack.c.l.b16 %v20
  %v57 = vunpack.c.l.b16 %v21
  %v58 = vunpack.c.l.b16 %v22
  %v59 = vunpack.c.l.b16 %v23
  %v60 = vunpack.c.l.b16 %v24
  %v61 = vunpack.c.l.b16 %v25
  %v62 = vpack.c.b16 %v55, %v54
  %v63 = vpack.c.b16 %v57, %v56
  %v64 = vpack.c.b16 %v59, %v58
  %v65 = vpack.c.b16 %v61, %v60
  %v86 = vunpack.c.l.b16 %v26
  %v87 = vunpack.c.l.b16 %v27
  %v88 = vunpack.c.l.b16 %v28
  %v89 = vunpack.c.l.b16 %v29
  %v90 = vunpack.c.l.b16 %v30
  %v91 = vunpack.c.l.b16 %v31
  %v92 = vunpack.c.l.b16 %v32
  %v93 = vunpack.c.l.b16 %v33
  %v94 = vunpack.c.l.b16 %v34
  %v95 = vunpack.c.l.b16 %v35
  %v96 = vunpack.c.l.b16 %v36
  %v97 = vunpack.c.l.b16 %v37
  %v98 = vunpack.c.l.b16 %v38
  %v99 = vunpack.c.l.b16 %v39
  %v100 = vunpack.c.l.b16 %v40
  %v101 = vunpack.c.l.b16 %v41
  %v102 = vpack.c.b16 %v87, %v86
  %v103 = vpack.c.b16 %v89, %v88
  %v104 = vpack.c.b16 %v91, %v90
  %v105 = vpack.c.b16 %v93, %v92
  %v106 = vpack.c.b16 %v95, %v94
  %v107 = vpack.c.b16 %v97, %v96
  %v108 = vpack.c.b16 %v99, %v98
  %v109 = vpack.c.b16 %v101, %v100
  %118 = vmatpush.bf16.msra.mxu0 %v109
  %119 = vmatpush.bf16.msra.mxu0 %v108
  %120 = vmatpush.bf16.msra.mxu0 %v107
  %121 = vmatpush.bf16.msra.mxu0 %v106
  %122 = vmatpush.bf16.msra.mxu0 %v105
  %123 = vmatpush.bf16.msra.mxu0 %v104
  %124 = vmatpush.bf16.msra.mxu0 %v103
  %125 = vmatpush.bf16.msra.mxu0 %v102
  %126 = vmatmul.bf16.gmra.mxu0 %v62
  %v127 = vpop.f32.mrf.mxu0
  %v128 = vadd.f32 %v44, %v127
  %v129 = vpop.f32.mrf.mxu0
  %v130 = vadd.f32 %v44, %v129
  %131 = vmatmul.bf16.gmra.mxu0 %v63
  %v132 = vpop.f32.mrf.mxu0
  %v133 = vadd.f32 %v44, %v132
  %v134 = vpop.f32.mrf.mxu0
  %v135 = vadd.f32 %v44, %v134
  %136 = vmatmul.bf16.gmra.mxu0 %v64
  %v137 = vpop.f32.mrf.mxu0
  %v138 = vadd.f32 %v44, %v137
  %v139 = vpop.f32.mrf.mxu0
  %v140 = vadd.f32 %v44, %v139
  %141 = vmatmul.bf16.gmra.mxu0 %v65
  %v142 = vpop.f32.mrf.mxu0
  %v143 = vadd.f32 %v44, %v142
  %v144 = vpop.f32.mrf.mxu0
  %v145 = vadd.f32 %v44, %v144
  %146 = vdwg.mxu0
  %v147 = vld [vmem:[%s2] sm:$0xf]
  %v148 = vld [vmem:[%s2 + $0x4] sm:$0xf]
  %v149 = vld [vmem:[%s2 + $0x8] sm:$0xf]
  %v150 = vld [vmem:[%s2 + $0xc] sm:$0xf]
  %v155 = vunpack.c.l.b16 %v147
  %v156 = vunpack.c.l.b16 %v148
  %v157 = vunpack.c.l.b16 %v149
  %v158 = vunpack.c.l.b16 %v150
  %v159 = vpack.c.b16 %v156, %v155
  %v160 = vpack.c.b16 %v158, %v157
  %vm163 = vcmask 261120
  %v165 = vsel %vm163, 0, 0
  %167 = vmatpush.bf16.msra.mxu0 0
  %168 = vmatpush.bf16.msra.mxu0 0
  %169 = vmatpush.bf16.msra.mxu0 0
  %170 = vmatpush.bf16.msra.mxu0 0
  %171 = vmatpush.bf16.msra.mxu0 0
  %172 = vmatpush.bf16.msra.mxu0 0
  %173 = vmatpush.bf16.msra.mxu0 %v160
  %174 = vmatpush.bf16.msra.mxu0 %v159
  %175 = vmatmul.bf16.gmra.mxu0 %v165
  %v176 = vpop.f32.mrf.mxu0
  %v177 = vadd.f32 0.0, %v176
  %v178 = vpop.f32.mrf.mxu0
  %179 = vdwg.mxu0
  %v180 = vadd.f32 %v128, %v177
  %v181 = vxor.u32 %v180, 2147483648
  %v182 = vmul.f32 %v181, 1.442695
  %v183 = vpow.pop %v182
  %v184 = vadd.f32 %v183, 1.0
  %v185 = vrcp.pop %v184
  %v186 = vmul.f32 %v184, %v185
  %v187 = vsub.f32 1.0, %v186
  %v188 = vmul.f32 %v185, %v187
  %v189 = vadd.f32 %v185, %v188
  %vm190 = vweird.f32 %v184
  %vm191 = vweird.f32 %v185
  %vm192 = vmor %vm190, %vm191
  %v193 = vsel %vm192, %v185, %v189
  %v194 = vand.u32 2147483647, %v184
  %vm195 = vcmp.eq.f32.partialorder %v194, 8.507059e+37
  %v196 = vand.u32 %v184, 2147483648
  %v197 = vor.u32 1.1754944e-38, %v196
  %v198 = vsel %vm195, %v197, %v193
  %v199 = vmul.f32 1.0, %v198
  %v200 = vtanh.pop %v180
  %v201 = vmul.f32 %v199, 0.0
  %203 = vrot.lane.b32.xlu0 %v200, 64
  %v204 = vpop.permute.xlu0 %203
  %v206 = vmul.f32 %v199, %v204
  %208 = vrot.lane.b32.xlu0 %v206, 32
  %v209 = vpop.permute.xlu0 %208
  %v211 = vadd.f32 %v201, %v209
  %v212 = vtanh.pop %v211
  %214 = vrot.lane.b32.xlu0 %v212, 64
  %v215 = vpop.permute.xlu0 %214
  %v217 = vmul.f32 %v199, %v215
  %v218 = vadd.f32 %v217, 0.0
  %v219 = vpack.c.bf16 %v217, %v217
  %221 = vrot.lane.b32.xlu0 %v219, 32
  %v222 = vpop.permute.xlu0 %221
  %v224 = vsel %vm163, %v222, 0
  %226 = vmatpush.bf16.msra.mxu0 0
  %227 = vmatpush.bf16.msra.mxu0 0
  %228 = vmatpush.bf16.msra.mxu0 0
  %229 = vmatpush.bf16.msra.mxu0 0
  %230 = vmatpush.bf16.msra.mxu0 0
  %231 = vmatpush.bf16.msra.mxu0 0
  %232 = vmatpush.bf16.msra.mxu0 %v160
  %233 = vmatpush.bf16.msra.mxu0 %v159
  %234 = vmatmul.bf16.gmra.mxu0 %v224
  %v235 = vpop.f32.mrf.mxu0
  %v236 = vadd.f32 0.0, %v235
  %v237 = vpop.f32.mrf.mxu0
  %238 = vdwg.mxu0
  %v239 = vadd.f32 %v130, %v236
  %v240 = vxor.u32 %v239, 2147483648
  %v241 = vmul.f32 %v240, 1.442695
  %v242 = vpow.pop %v241
  %v243 = vadd.f32 %v242, 1.0
  %v244 = vrcp.pop %v243
  %v245 = vmul.f32 %v243, %v244
  %v246 = vsub.f32 1.0, %v245
  %v247 = vmul.f32 %v244, %v246
  %v248 = vadd.f32 %v244, %v247
  %vm249 = vweird.f32 %v243
  %vm250 = vweird.f32 %v244
  %vm251 = vmor %vm249, %vm250
  %v252 = vsel %vm251, %v244, %v248
  %v253 = vand.u32 2147483647, %v243
  %vm254 = vcmp.eq.f32.partialorder %v253, 8.507059e+37
  %v255 = vand.u32 %v243, 2147483648
  %v256 = vor.u32 1.1754944e-38, %v255
  %v257 = vsel %vm254, %v256, %v252
  %v258 = vmul.f32 1.0, %v257
  %v259 = vtanh.pop %v239
  %v260 = vmul.f32 %v258, %v211
  %262 = vrot.lane.b32.xlu0 %v259, 64
  %v263 = vpop.permute.xlu0 %262
  %v265 = vmul.f32 %v258, %v263
  %267 = vrot.lane.b32.xlu0 %v265, 32
  %v268 = vpop.permute.xlu0 %267
  %v270 = vadd.f32 %v260, %v268
  %v271 = vtanh.pop %v270
  %273 = vrot.lane.b32.xlu0 %v271, 64
  %v274 = vpop.permute.xlu0 %273
  %v276 = vmul.f32 %v258, %v274
  %v277 = vadd.f32 %v218, %v276
  %v278 = vpack.c.bf16 %v276, %v276
  %280 = vrot.lane.b32.xlu0 %v278, 32
  %v281 = vpop.permute.xlu0 %280
  %v283 = vsel %vm163, %v281, 0
  %285 = vmatpush.bf16.msra.mxu0 0
  %286 = vmatpush.bf16.msra.mxu0 0
  %287 = vmatpush.bf16.msra.mxu0 0
  %288 = vmatpush.bf16.msra.mxu0 0
  %289 = vmatpush.bf16.msra.mxu0 0
  %290 = vmatpush.bf16.msra.mxu0 0
  %291 = vmatpush.bf16.msra.mxu0 %v160
  %292 = vmatpush.bf16.msra.mxu0 %v159
  %293 = vmatmul.bf16.gmra.mxu0 %v283
  %v294 = vpop.f32.mrf.mxu0
  %v295 = vadd.f32 0.0, %v294
  %v296 = vpop.f32.mrf.mxu0
  %297 = vdwg.mxu0
  %v298 = vadd.f32 %v133, %v295
  %v299 = vxor.u32 %v298, 2147483648
  %v300 = vmul.f32 %v299, 1.442695
  %v301 = vpow.pop %v300
  %v302 = vadd.f32 %v301, 1.0
  %v303 = vrcp.pop %v302
  %v304 = vmul.f32 %v302, %v303
  %v305 = vsub.f32 1.0, %v304
  %v306 = vmul.f32 %v303, %v305
  %v307 = vadd.f32 %v303, %v306
  %vm308 = vweird.f32 %v302
  %vm309 = vweird.f32 %v303
  %vm310 = vmor %vm308, %vm309
  %v311 = vsel %vm310, %v303, %v307
  %v312 = vand.u32 2147483647, %v302
  %vm313 = vcmp.eq.f32.partialorder %v312, 8.507059e+37
  %v314 = vand.u32 %v302, 2147483648
  %v315 = vor.u32 1.1754944e-38, %v314
  %v316 = vsel %vm313, %v315, %v311
  %v317 = vmul.f32 1.0, %v316
  %v318 = vtanh.pop %v298
  %v319 = vmul.f32 %v317, %v270
  %321 = vrot.lane.b32.xlu0 %v318, 64
  %v322 = vpop.permute.xlu0 %321
  %v324 = vmul.f32 %v317, %v322
  %326 = vrot.lane.b32.xlu0 %v324, 32
  %v327 = vpop.permute.xlu0 %326
  %v329 = vadd.f32 %v319, %v327
  %v330 = vtanh.pop %v329
  %332 = vrot.lane.b32.xlu0 %v330, 64
  %v333 = vpop.permute.xlu0 %332
  %v335 = vmul.f32 %v317, %v333
  %v336 = vadd.f32 %v277, %v335
  %v337 = vpack.c.bf16 %v335, %v335
  %339 = vrot.lane.b32.xlu0 %v337, 32
  %v340 = vpop.permute.xlu0 %339
  %v342 = vsel %vm163, %v340, 0
  %344 = vmatpush.bf16.msra.mxu0 0
  %345 = vmatpush.bf16.msra.mxu0 0
  %346 = vmatpush.bf16.msra.mxu0 0
  %347 = vmatpush.bf16.msra.mxu0 0
  %348 = vmatpush.bf16.msra.mxu0 0
  %349 = vmatpush.bf16.msra.mxu0 0
  %350 = vmatpush.bf16.msra.mxu0 %v160
  %351 = vmatpush.bf16.msra.mxu0 %v159
  %352 = vmatmul.bf16.gmra.mxu0 %v342
  %v353 = vpop.f32.mrf.mxu0
  %v354 = vadd.f32 0.0, %v353
  %v355 = vpop.f32.mrf.mxu0
  %356 = vdwg.mxu0
  %v357 = vadd.f32 %v135, %v354
  %v358 = vxor.u32 %v357, 2147483648
  %v359 = vmul.f32 %v358, 1.442695
  %v360 = vpow.pop %v359
  %v361 = vadd.f32 %v360, 1.0
  %v362 = vrcp.pop %v361
  %v363 = vmul.f32 %v361, %v362
  %v364 = vsub.f32 1.0, %v363
  %v365 = vmul.f32 %v362, %v364
  %v366 = vadd.f32 %v362, %v365
  %vm367 = vweird.f32 %v361
  %vm368 = vweird.f32 %v362
  %vm369 = vmor %vm367, %vm368
  %v370 = vsel %vm369, %v362, %v366
  %v371 = vand.u32 2147483647, %v361
  %vm372 = vcmp.eq.f32.partialorder %v371, 8.507059e+37
  %v373 = vand.u32 %v361, 2147483648
  %v374 = vor.u32 1.1754944e-38, %v373
  %v375 = vsel %vm372, %v374, %v370
  %v376 = vmul.f32 1.0, %v375
  %v377 = vtanh.pop %v357
  %v378 = vmul.f32 %v376, %v329
  %380 = vrot.lane.b32.xlu0 %v377, 64
  %v381 = vpop.permute.xlu0 %380
  %v383 = vmul.f32 %v376, %v381
  %385 = vrot.lane.b32.xlu0 %v383, 32
  %v386 = vpop.permute.xlu0 %385
  %v388 = vadd.f32 %v378, %v386
  %v389 = vtanh.pop %v388
  %391 = vrot.lane.b32.xlu0 %v389, 64
  %v392 = vpop.permute.xlu0 %391
  %v394 = vmul.f32 %v376, %v392
  %v395 = vadd.f32 %v336, %v394
  %v396 = vpack.c.bf16 %v394, %v394
  %398 = vrot.lane.b32.xlu0 %v396, 32
  %v399 = vpop.permute.xlu0 %398
  %v401 = vsel %vm163, %v399, 0
  %403 = vmatpush.bf16.msra.mxu0 0
  %404 = vmatpush.bf16.msra.mxu0 0
  %405 = vmatpush.bf16.msra.mxu0 0
  %406 = vmatpush.bf16.msra.mxu0 0
  %407 = vmatpush.bf16.msra.mxu0 0
  %408 = vmatpush.bf16.msra.mxu0 0
  %409 = vmatpush.bf16.msra.mxu0 %v160
  %410 = vmatpush.bf16.msra.mxu0 %v159
  %411 = vmatmul.bf16.gmra.mxu0 %v401
  %v412 = vpop.f32.mrf.mxu0
  %v413 = vadd.f32 0.0, %v412
  %v414 = vpop.f32.mrf.mxu0
  %415 = vdwg.mxu0
  %v416 = vadd.f32 %v138, %v413
  %v417 = vxor.u32 %v416, 2147483648
  %v418 = vmul.f32 %v417, 1.442695
  %v419 = vpow.pop %v418
  %v420 = vadd.f32 %v419, 1.0
  %v421 = vrcp.pop %v420
  %v422 = vmul.f32 %v420, %v421
  %v423 = vsub.f32 1.0, %v422
  %v424 = vmul.f32 %v421, %v423
  %v425 = vadd.f32 %v421, %v424
  %vm426 = vweird.f32 %v420
  %vm427 = vweird.f32 %v421
  %vm428 = vmor %vm426, %vm427
  %v429 = vsel %vm428, %v421, %v425
  %v430 = vand.u32 2147483647, %v420
  %vm431 = vcmp.eq.f32.partialorder %v430, 8.507059e+37
  %v432 = vand.u32 %v420, 2147483648
  %v433 = vor.u32 1.1754944e-38, %v432
  %v434 = vsel %vm431, %v433, %v429
  %v435 = vmul.f32 1.0, %v434
  %v436 = vtanh.pop %v416
  %v437 = vmul.f32 %v435, %v388
  %439 = vrot.lane.b32.xlu0 %v436, 64
  %v440 = vpop.permute.xlu0 %439
  %v442 = vmul.f32 %v435, %v440
  %444 = vrot.lane.b32.xlu0 %v442, 32
  %v445 = vpop.permute.xlu0 %444
  %v447 = vadd.f32 %v437, %v445
  %v448 = vtanh.pop %v447
  %450 = vrot.lane.b32.xlu0 %v448, 64
  %v451 = vpop.permute.xlu0 %450
  %v453 = vmul.f32 %v435, %v451
  %v454 = vadd.f32 %v395, %v453
  %v455 = vpack.c.bf16 %v453, %v453
  %457 = vrot.lane.b32.xlu0 %v455, 32
  %v458 = vpop.permute.xlu0 %457
  %v460 = vsel %vm163, %v458, 0
  %462 = vmatpush.bf16.msra.mxu0 0
  %463 = vmatpush.bf16.msra.mxu0 0
  %464 = vmatpush.bf16.msra.mxu0 0
  %465 = vmatpush.bf16.msra.mxu0 0
  %466 = vmatpush.bf16.msra.mxu0 0
  %467 = vmatpush.bf16.msra.mxu0 0
  %468 = vmatpush.bf16.msra.mxu0 %v160
  %469 = vmatpush.bf16.msra.mxu0 %v159
  %470 = vmatmul.bf16.gmra.mxu0 %v460
  %v471 = vpop.f32.mrf.mxu0
  %v472 = vadd.f32 0.0, %v471
  %v473 = vpop.f32.mrf.mxu0
  %474 = vdwg.mxu0
  %v475 = vadd.f32 %v140, %v472
  %v476 = vxor.u32 %v475, 2147483648
  %v477 = vmul.f32 %v476, 1.442695
  %v478 = vpow.pop %v477
  %v479 = vadd.f32 %v478, 1.0
  %v480 = vrcp.pop %v479
  %v481 = vmul.f32 %v479, %v480
  %v482 = vsub.f32 1.0, %v481
  %v483 = vmul.f32 %v480, %v482
  %v484 = vadd.f32 %v480, %v483
  %vm485 = vweird.f32 %v479
  %vm486 = vweird.f32 %v480
  %vm487 = vmor %vm485, %vm486
  %v488 = vsel %vm487, %v480, %v484
  %v489 = vand.u32 2147483647, %v479
  %vm490 = vcmp.eq.f32.partialorder %v489, 8.507059e+37
  %v491 = vand.u32 %v479, 2147483648
  %v492 = vor.u32 1.1754944e-38, %v491
  %v493 = vsel %vm490, %v492, %v488
  %v494 = vmul.f32 1.0, %v493
  %v495 = vtanh.pop %v475
  %v496 = vmul.f32 %v494, %v447
  %498 = vrot.lane.b32.xlu0 %v495, 64
  %v499 = vpop.permute.xlu0 %498
  %v501 = vmul.f32 %v494, %v499
  %503 = vrot.lane.b32.xlu0 %v501, 32
  %v504 = vpop.permute.xlu0 %503
  %v506 = vadd.f32 %v496, %v504
  %v507 = vtanh.pop %v506
  %509 = vrot.lane.b32.xlu0 %v507, 64
  %v510 = vpop.permute.xlu0 %509
  %v512 = vmul.f32 %v494, %v510
  %v513 = vadd.f32 %v454, %v512
  %v514 = vpack.c.bf16 %v512, %v512
  %516 = vrot.lane.b32.xlu0 %v514, 32
  %v517 = vpop.permute.xlu0 %516
  %v519 = vsel %vm163, %v517, 0
  %521 = vmatpush.bf16.msra.mxu0 0
  %522 = vmatpush.bf16.msra.mxu0 0
  %523 = vmatpush.bf16.msra.mxu0 0
  %524 = vmatpush.bf16.msra.mxu0 0
  %525 = vmatpush.bf16.msra.mxu0 0
  %526 = vmatpush.bf16.msra.mxu0 0
  %527 = vmatpush.bf16.msra.mxu0 %v160
  %528 = vmatpush.bf16.msra.mxu0 %v159
  %529 = vmatmul.bf16.gmra.mxu0 %v519
  %v530 = vpop.f32.mrf.mxu0
  %v531 = vadd.f32 0.0, %v530
  %v532 = vpop.f32.mrf.mxu0
  %533 = vdwg.mxu0
  %v534 = vadd.f32 %v143, %v531
  %v535 = vxor.u32 %v534, 2147483648
  %v536 = vmul.f32 %v535, 1.442695
  %v537 = vpow.pop %v536
  %v538 = vadd.f32 %v537, 1.0
  %v539 = vrcp.pop %v538
  %v540 = vmul.f32 %v538, %v539
  %v541 = vsub.f32 1.0, %v540
  %v542 = vmul.f32 %v539, %v541
  %v543 = vadd.f32 %v539, %v542
  %vm544 = vweird.f32 %v538
  %vm545 = vweird.f32 %v539
  %vm546 = vmor %vm544, %vm545
  %v547 = vsel %vm546, %v539, %v543
  %v548 = vand.u32 2147483647, %v538
  %vm549 = vcmp.eq.f32.partialorder %v548, 8.507059e+37
  %v550 = vand.u32 %v538, 2147483648
  %v551 = vor.u32 1.1754944e-38, %v550
  %v552 = vsel %vm549, %v551, %v547
  %v553 = vmul.f32 1.0, %v552
  %v554 = vtanh.pop %v534
  %v555 = vmul.f32 %v553, %v506
  %557 = vrot.lane.b32.xlu0 %v554, 64
  %v558 = vpop.permute.xlu0 %557
  %v560 = vmul.f32 %v553, %v558
  %562 = vrot.lane.b32.xlu0 %v560, 32
  %v563 = vpop.permute.xlu0 %562
  %v565 = vadd.f32 %v555, %v563
  %v566 = vtanh.pop %v565
  %568 = vrot.lane.b32.xlu0 %v566, 64
  %v569 = vpop.permute.xlu0 %568
  %v571 = vmul.f32 %v553, %v569
  %v572 = vadd.f32 %v513, %v571
  %v573 = vpack.c.bf16 %v571, %v571
  %575 = vrot.lane.b32.xlu0 %v573, 32
  %v576 = vpop.permute.xlu0 %575
  %v578 = vsel %vm163, %v576, 0
  %580 = vmatpush.bf16.msra.mxu0 0
  %581 = vmatpush.bf16.msra.mxu0 0
  %582 = vmatpush.bf16.msra.mxu0 0
  %583 = vmatpush.bf16.msra.mxu0 0
  %584 = vmatpush.bf16.msra.mxu0 0
  %585 = vmatpush.bf16.msra.mxu0 0
  %586 = vmatpush.bf16.msra.mxu0 %v160
  %587 = vmatpush.bf16.msra.mxu0 %v159
  %588 = vmatmul.bf16.gmra.mxu0 %v578
  %v589 = vpop.f32.mrf.mxu0
  %v590 = vadd.f32 0.0, %v589
  %v591 = vpop.f32.mrf.mxu0
  %592 = vdwg.mxu0
  %v593 = vadd.f32 %v145, %v590
  %v594 = vxor.u32 %v593, 2147483648
  %v595 = vmul.f32 %v594, 1.442695
  %v596 = vpow.pop %v595
  %v597 = vadd.f32 %v596, 1.0
  %v598 = vrcp.pop %v597
  %v599 = vmul.f32 %v597, %v598
  %v600 = vsub.f32 1.0, %v599
  %v601 = vmul.f32 %v598, %v600
  %v602 = vadd.f32 %v598, %v601
  %vm603 = vweird.f32 %v597
  %vm604 = vweird.f32 %v598
  %vm605 = vmor %vm603, %vm604
  %v606 = vsel %vm605, %v598, %v602
  %v607 = vand.u32 2147483647, %v597
  %vm608 = vcmp.eq.f32.partialorder %v607, 8.507059e+37
  %v609 = vand.u32 %v597, 2147483648
  %v610 = vor.u32 1.1754944e-38, %v609
  %v611 = vsel %vm608, %v610, %v606
  %v612 = vmul.f32 1.0, %v611
  %v613 = vtanh.pop %v593
  %v614 = vmul.f32 %v612, %v565
  %616 = vrot.lane.b32.xlu0 %v613, 64
  %v617 = vpop.permute.xlu0 %616
  %v619 = vmul.f32 %v612, %v617
  %621 = vrot.lane.b32.xlu0 %v619, 32
  %v622 = vpop.permute.xlu0 %621
  %v624 = vadd.f32 %v614, %v622
  %v625 = vtanh.pop %v624
  %627 = vrot.lane.b32.xlu0 %v625, 64
  %v628 = vpop.permute.xlu0 %627
  %v630 = vmul.f32 %v612, %v628
  %v631 = vadd.f32 %v572, %v630
  %633 = vrot.lane.b32.xlu0 %v630, 32
  %v634 = vpop.permute.xlu0 %633
  %637 = vrot.lane.b32.xlu0 %v631, 64
  %v638 = vpop.permute.xlu0 %637
  %v640 = vsel %vm163, %v634, %v638
  %vm641 = vcmask 523264
  %v642 = vsel %vm641, %v640, 0.0
  %643 = vst [vmem:[%s4] sm:$0xff] %v642
  // Predicated region
  $region18: #{lstm_forward.1} parent=0 // pred_check
    _
  $region19: #{lstm_forward.1} parent=0 // pred_check_branch
    %645 = sbr.rel (0) target = $region21
  $region20: #{lstm_forward.1} parent=0 // pred_region
    _
  $region21: #{lstm_forward.1} parent=0 // pred_fallthru
    _
  // Predicated region
  $region22: #{lstm_forward.1} parent=0 // pred_check
    _
  $region23: #{lstm_forward.1} parent=0 // pred_check_branch
    %647 = sbr.rel (0) target = $region25
  $region24: #{lstm_forward.1} parent=0 // pred_region
    _
  $region25: #{lstm_forward.1} parent=0 // pred_fallthru
    _

</llo_original>
